<compile_context>
chip_gen: v7x
topology: tpu7x:2x2x1
jax: 0.10.0
libtpu: 0.0.40
codegen_flags: <defaults>
</compile_context>

<pallas_src>
import jax
import jax.numpy as jnp
from jax.experimental import pallas as pl
from jax.experimental.pallas import tpu as pltpu


def _cdiv(a, b):
    return (a + b - 1) // b


def _round_up(a, b):
    return _cdiv(a, b) * b


def _vmem_budget():
    """(per-input block bytes, scoped-VMEM limit), gated by generation."""
    block_bytes, vmem_limit = 4 << 20, 32 << 20          # safe on v5e/v6e/v7x
    try:
        cap = int(pltpu.get_tpu_info().vmem_capacity_bytes)
        if cap >= (128 << 20):                            # v5e / v6e
            block_bytes, vmem_limit = 8 << 20, 64 << 20
    except Exception:
        pass
    return block_bytes, vmem_limit


def _make_kernel(n_total, n_tile, blocks_per_split, needs_mask):
    def kernel(pred_ref, target_ref, iand_ref, s_ref):
        sj = pl.program_id(2)

        # Reset per-sample accumulators at the start of each spatial sweep
        # (outputs are resident across the "arbitrary" spatial axis).
        @pl.when(sj == 0)
        def _():
            iand_ref[...] = jnp.zeros_like(iand_ref)
            s_ref[...] = jnp.zeros_like(s_ref)

        p = pred_ref[...].astype(jnp.float32)
        t = target_ref[...].astype(jnp.float32)

        if needs_mask:
            # Partial edge / overhang block: zero lanes past the true spatial
            # extent.  jnp.where (not a multiply) so stale garbage — possibly
            # NaN bit patterns — in out-of-bounds lanes cannot poison the sums.
            g = pl.program_id(0) * blocks_per_split + sj
            lane = jax.lax.broadcasted_iota(jnp.int32, p.shape, 1)
            col = g * n_tile + lane
            valid = col < n_total
            p = jnp.where(valid, p, 0.0)
            t = jnp.where(valid, t, 0.0)

        # Two reductions per tile: iand = sum(t*p), s = sum(t+p); the wrapper
        # computes union = s - iand and the single divide per sample.
        iand_ref[...] += jnp.sum(t * p, axis=-1, keepdims=True)
        s_ref[...] += jnp.sum(t + p, axis=-1, keepdims=True)

    return kernel


def iou_loss(pred, target):
    """Pallas implementation of IoU_loss.forward(pred, target) -> scalar f32."""
    assert pred.shape == target.shape
    B = pred.shape[0]
    n = 1
    for d in pred.shape[1:]:
        n *= d

    # Lane-dense (B, N) views — metadata-only for contiguous NCHW, no pad copy.
    p2 = pred.reshape(B, n)
    t2 = target.reshape(B, n)

    # Sublane granule from the most-packed input dtype (f32->8, bf16->16, i8->32).
    min_item = max(1, min(4, min(p2.dtype.itemsize, t2.dtype.itemsize)))
    granule = 8 * (4 // min_item)
    max_item = max(1, p2.dtype.itemsize, t2.dtype.itemsize)

    # Adaptive block: target ~block_bytes moved per input per grid step.
    block_bytes, vmem_limit = _vmem_budget()
    elems = max(block_bytes // max_item, granule * 128)
    n_tile_cap = max(128, (elems // granule) // 128 * 128)
    n_tile = min(_round_up(n, 128), n_tile_cap)
    rows_fit = max(granule, (elems // n_tile) // granule * granule)
    b_tile = min(rows_fit, _round_up(B, granule))

    batch_blocks = _cdiv(B, b_tile)
    spatial_blocks = _cdiv(n, n_tile)

    # v7x megacore: if the parallel batch axis has a single block, split the
    # spatial range 2-way ("parallel") so both TensorCores get work.
    num_splits = 2 if (batch_blocks < 2 and spatial_blocks >= 2) else 1
    bps = _cdiv(spatial_blocks, num_splits)

    needs_mask = (n % n_tile != 0) or (num_splits * bps != spatial_blocks)

    kernel = _make_kernel(n, n_tile, bps, needs_mask)

    def in_map(s, bi, sj):
        # Clamp so overhang steps of an uneven split never index out of range;
        # their contribution is zeroed by the in-kernel mask.
        return (bi, jnp.minimum(s * bps + sj, spatial_blocks - 1))

    out_map = lambda s, bi, sj: (s, bi, 0)

    iand_parts, s_parts = pl.pallas_call(
        kernel,
        out_shape=(
            jax.ShapeDtypeStruct((num_splits, B, 1), jnp.float32),
            jax.ShapeDtypeStruct((num_splits, B, 1), jnp.float32),
        ),
        grid_spec=pltpu.PrefetchScalarGridSpec(
            num_scalar_prefetch=0,
            grid=(num_splits, batch_blocks, bps),
            in_specs=[
                pl.BlockSpec((b_tile, n_tile), in_map),
                pl.BlockSpec((b_tile, n_tile), in_map),
            ],
            out_specs=[
                pl.BlockSpec((None, b_tile, 1), out_map),
                pl.BlockSpec((None, b_tile, 1), out_map),
            ],
        ),
        compiler_params=pltpu.CompilerParams(
            dimension_semantics=("parallel", "parallel", "arbitrary"),
            vmem_limit_bytes=vmem_limit,
        ),
    )(p2, t2)

    # Combine split partials, drop out-of-range batch rows BEFORE the divide
    # (garbage rows can never inject NaN), then one divide per valid sample.
    iand = jnp.sum(iand_parts[:, :B, 0], axis=0)
    s = jnp.sum(s_parts[:, :B, 0], axis=0)
    # NOTE: a genuinely all-zero sample gives 0/0 = NaN, matching the PyTorch
    # reference (no epsilon in the divide).
    return jnp.sum(1.0 - iand / (s - iand))


def _iou_loss_ref(pred, target):
    # Pure-JAX reference mirroring the PyTorch loop semantics.
    axes = tuple(range(1, pred.ndim))
    iand = jnp.sum(target * pred, axis=axes)
    ior = jnp.sum(target, axis=axes) + jnp.sum(pred, axis=axes) - iand
    return jnp.sum(1.0 - iand / ior)


if __name__ == "__main__":
    key = jax.random.PRNGKey(0)
    k1, k2, k3, k4 = jax.random.split(key, 4)

    # Primary small test matching the module's NCHW inputs.
    B, C, H, W = 2, 4, 16, 16
    pred = jax.nn.sigmoid(jax.random.normal(k1, (B, C, H, W), dtype=jnp.float32))
    target = (jax.random.uniform(k2, (B, C, H, W)) > 0.5).astype(jnp.float32)

    loss = jax.block_until_ready(iou_loss(pred, target))
    ref = jax.block_until_ready(_iou_loss_ref(pred, target))
    assert jnp.allclose(loss, ref, rtol=1e-5, atol=1e-5), (loss, ref)

    # Secondary test: unaligned batch / spatial extents exercise the pad-free
    # edge-block masking and (for single-block batch) the 2-way spatial split.
    B2, C2, H2, W2 = 3, 1, 257, 1023
    pred2 = jax.nn.sigmoid(jax.random.normal(k3, (B2, C2, H2, W2), dtype=jnp.float32))
    target2 = (jax.random.uniform(k4, (B2, C2, H2, W2)) > 0.5).astype(jnp.float32)

    loss2 = jax.block_until_ready(iou_loss(pred2, target2))
    ref2 = jax.block_until_ready(_iou_loss_ref(pred2, target2))
    assert jnp.allclose(loss2, ref2, rtol=1e-5, atol=1e-5), (loss2, ref2)

    print("KERNEL_OK")
</pallas_src>

<mosaic_0001>
module attributes {stable_mosaic.version = 11 : i64} {
  func.func @kernel(%arg0: i32, %arg1: i32, %arg2: i32, %arg3: memref<8x1024xf32, #tpu.memory_space<vmem>>, %arg4: memref<8x1024xf32, #tpu.memory_space<vmem>>, %arg5: memref<1x8x1xf32, #tpu.memory_space<vmem>>, %arg6: memref<1x8x1xf32, #tpu.memory_space<vmem>>) attributes {dimension_semantics = [#tpu.dimension_semantics<parallel>, #tpu.dimension_semantics<parallel>, #tpu.dimension_semantics<arbitrary>], iteration_bounds = array<i64: 1, 1, 1>, scalar_prefetch = 0 : i64, scratch_operands = 0 : i64, tpu.core_type = #tpu.core_type<tc>, window_params = [{transform_indices = @transform_0, window_bounds = array<i64: 8, 1024>}, {transform_indices = @transform_1, window_bounds = array<i64: 8, 1024>}, {transform_indices = @transform_2, window_bounds = array<i64: 1, 8, 1>}, {transform_indices = @transform_3, window_bounds = array<i64: 1, 8, 1>}]} {
    %c0_i32 = arith.constant 0 : i32
    %0 = arith.cmpi eq, %arg2, %c0_i32 : i32
    %1 = arith.extui %0 : i1 to i32
    %c0_i32_0 = arith.constant 0 : i32
    %2 = arith.cmpi ne, %1, %c0_i32_0 : i32
    scf.if %2 {
      %cst_17 = arith.constant 0.000000e+00 : f32
      %23 = vector.broadcast %cst_17 : f32 to vector<8x1xf32>
      %c0_18 = arith.constant 0 : index
      %c0_19 = arith.constant 0 : index
      %c0_20 = arith.constant 0 : index
      %24 = vector.load %arg5[%c0_18, %c0_19, %c0_20] : memref<1x8x1xf32, #tpu.memory_space<vmem>>, vector<1x8x1xf32>
      %25 = vector.shape_cast %24 : vector<1x8x1xf32> to vector<8x1xf32>
      %26 = vector.shape_cast %23 : vector<8x1xf32> to vector<1x8x1xf32>
      tpu.vector_store %arg5[%c0_18, %c0_19, %c0_20], %26 {strides = array<i32>} : memref<1x8x1xf32, #tpu.memory_space<vmem>>, vector<1x8x1xf32>,
      %cst_21 = arith.constant 0.000000e+00 : f32
      %27 = vector.broadcast %cst_21 : f32 to vector<8x1xf32>
      %c0_22 = arith.constant 0 : index
      %c0_23 = arith.constant 0 : index
      %c0_24 = arith.constant 0 : index
      %28 = vector.load %arg6[%c0_22, %c0_23, %c0_24] : memref<1x8x1xf32, #tpu.memory_space<vmem>>, vector<1x8x1xf32>
      %29 = vector.shape_cast %28 : vector<1x8x1xf32> to vector<8x1xf32>
      %30 = vector.shape_cast %27 : vector<8x1xf32> to vector<1x8x1xf32>
      tpu.vector_store %arg6[%c0_22, %c0_23, %c0_24], %30 {strides = array<i32>} : memref<1x8x1xf32, #tpu.memory_space<vmem>>, vector<1x8x1xf32>,
    } else {
    }
    %c0 = arith.constant 0 : index
    %c0_1 = arith.constant 0 : index
    %3 = vector.load %arg3[%c0, %c0_1] : memref<8x1024xf32, #tpu.memory_space<vmem>>, vector<8x1024xf32>
    %c0_2 = arith.constant 0 : index
    %c0_3 = arith.constant 0 : index
    %4 = vector.load %arg4[%c0_2, %c0_3] : memref<8x1024xf32, #tpu.memory_space<vmem>>, vector<8x1024xf32>
    %c0_4 = arith.constant 0 : index
    %c0_5 = arith.constant 0 : index
    %c0_6 = arith.constant 0 : index
    %5 = vector.load %arg5[%c0_4, %c0_5, %c0_6] : memref<1x8x1xf32, #tpu.memory_space<vmem>>, vector<1x8x1xf32>
    %6 = vector.shape_cast %5 : vector<1x8x1xf32> to vector<8x1xf32>
    %7 = arith.mulf %4, %3 : vector<8x1024xf32>
    %cst = arith.constant dense<0.000000e+00> : vector<8xf32>
    %8 = vector.multi_reduction <add>, %7, %cst [1] : vector<8x1024xf32> to vector<8xf32>
    %9 = vector.shape_cast %8 : vector<8xf32> to vector<8x1xf32>
    %10 = arith.addf %6, %9 : vector<8x1xf32>
    %c0_7 = arith.constant 0 : index
    %c0_8 = arith.constant 0 : index
    %c0_9 = arith.constant 0 : index
    %11 = vector.load %arg5[%c0_7, %c0_8, %c0_9] : memref<1x8x1xf32, #tpu.memory_space<vmem>>, vector<1x8x1xf32>
    %12 = vector.shape_cast %11 : vector<1x8x1xf32> to vector<8x1xf32>
    %13 = vector.shape_cast %10 : vector<8x1xf32> to vector<1x8x1xf32>
    tpu.vector_store %arg5[%c0_7, %c0_8, %c0_9], %13 {strides = array<i32>} : memref<1x8x1xf32, #tpu.memory_space<vmem>>, vector<1x8x1xf32>,
    %c0_10 = arith.constant 0 : index
    %c0_11 = arith.constant 0 : index
    %c0_12 = arith.constant 0 : index
    %14 = vector.load %arg6[%c0_10, %c0_11, %c0_12] : memref<1x8x1xf32, #tpu.memory_space<vmem>>, vector<1x8x1xf32>
    %15 = vector.shape_cast %14 : vector<1x8x1xf32> to vector<8x1xf32>
    %16 = arith.addf %4, %3 : vector<8x1024xf32>
    %cst_13 = arith.constant dense<0.000000e+00> : vector<8xf32>
    %17 = vector.multi_reduction <add>, %16, %cst_13 [1] : vector<8x1024xf32> to vector<8xf32>
    %18 = vector.shape_cast %17 : vector<8xf32> to vector<8x1xf32>
    %19 = arith.addf %15, %18 : vector<8x1xf32>
    %c0_14 = arith.constant 0 : index
    %c0_15 = arith.constant 0 : index
    %c0_16 = arith.constant 0 : index
    %20 = vector.load %arg6[%c0_14, %c0_15, %c0_16] : memref<1x8x1xf32, #tpu.memory_space<vmem>>, vector<1x8x1xf32>
    %21 = vector.shape_cast %20 : vector<1x8x1xf32> to vector<8x1xf32>
    %22 = vector.shape_cast %19 : vector<8x1xf32> to vector<1x8x1xf32>
    tpu.vector_store %arg6[%c0_14, %c0_15, %c0_16], %22 {strides = array<i32>} : memref<1x8x1xf32, #tpu.memory_space<vmem>>, vector<1x8x1xf32>,
    return
  }
  func.func @transform_0(%arg0: i32, %arg1: i32, %arg2: i32) -> (i32, i32) {
    %c1_i32 = arith.constant 1 : i32
    %0 = arith.muli %arg0, %c1_i32 : i32
    %1 = arith.addi %0, %arg2 : i32
    %c0_i32 = arith.constant 0 : i32
    %2 = arith.minsi %1, %c0_i32 : i32
    %c0_i32_0 = arith.constant 0 : i32
    return %arg1, %2 : i32, i32
  }
  func.func @transform_1(%arg0: i32, %arg1: i32, %arg2: i32) -> (i32, i32) {
    %c1_i32 = arith.constant 1 : i32
    %0 = arith.muli %arg0, %c1_i32 : i32
    %1 = arith.addi %0, %arg2 : i32
    %c0_i32 = arith.constant 0 : i32
    %2 = arith.minsi %1, %c0_i32 : i32
    %c0_i32_0 = arith.constant 0 : i32
    return %arg1, %2 : i32, i32
  }
  func.func @transform_2(%arg0: i32, %arg1: i32, %arg2: i32) -> (i32, i32, i32) {
    %c0_i32 = arith.constant 0 : i32
    %c0_i32_0 = arith.constant 0 : i32
    return %arg0, %arg1, %c0_i32 : i32, i32, i32
  }
  func.func @transform_3(%arg0: i32, %arg1: i32, %arg2: i32) -> (i32, i32, i32) {
    %c0_i32 = arith.constant 0 : i32
    %c0_i32_0 = arith.constant 0 : i32
    return %arg0, %arg1, %c0_i32 : i32, i32, i32
  }
}

</mosaic_0001>

<llo_original>
// kernel: tpu_custom_call.1
$region0: #{tpu_custom_call.1}
  #allocation0 [shape = 'u32[]', space=smem, size = 0x4, offset = 0x4, fixed_abs, tag = 'smem constant byte address 0x4 - core index']
  #allocation1 [shape = 'u32[144,128]{1,0:T(1,128)}', space=vmem, size = 0x12000, scoped, tag = 'internal scratch']
  %s0 = inlined_call_operand.hbm [shape: f32[2,1024], index: 0, kind: input, shape index: {}]
  %s1 = inlined_call_operand.hbm [shape: f32[2,1024], index: 1, kind: input, shape index: {}]
  %s2 = inlined_call_operand.vmem [shape: f32[1,2,1], index: 2, kind: output, shape index: {0}]
  %s3 = inlined_call_operand.vmem [shape: f32[1,2,1], index: 3, kind: output, shape index: {1}]
  %4 = xla_tuple %s2, %s3
  %s5 = sld [smem:[#allocation0]]
  $region98: #{tpu_custom_call.1} parent=0
    _
  %s7 = ssub.s32 1, %s5
  %s8 = scalar_select 0, %s7, %s5
  $region1: #{tpu_custom_call.1} parent=0
    #allocation2 [shape = 'u8[32768]{0}', space=vmem, size = 0x8000, scoped, tag = 'input window, operand 0, single buffered']
    #allocation3 [shape = 's32[1]{0}', space=sflag, size = 0x4, scoped, tag = 'scoped memory for tpu_custom_call.1']
    #allocation4 [shape = 'u8[32768]{0}', space=vmem, size = 0x8000, scoped, tag = 'input window, operand 1, single buffered']
    #allocation5 [shape = 's32[1]{0}', space=sflag, size = 0x4, scoped, tag = 'scoped memory for tpu_custom_call.1']
    #allocation6 [shape = 'u8[4096]{0}', space=vmem, size = 0x1000, scoped, tag = 'output window, operand 0, single buffered']
    #allocation7 [shape = 'u8[4096]{0}', space=vmem, size = 0x1000, scoped, tag = 'output window, operand 1, single buffered']
    %9 = vsyncpa [#allocation3], 0
    %10 = vsyncpa [#allocation5], 0
    // Predicated region
    $region2: #{tpu_custom_call.1} parent=1 // pred_check
      _
    $region3: #{tpu_custom_call.1} parent=1 // pred_check_branch
      %12 = sbr.rel (0) target = $region5
    $region4: #{tpu_custom_call.1} parent=1 // pred_region
      %s13 = sadd.s32 0, 0
      %p14 = scmp.lt.s32.totalorder %s13, 0
      %s15 = scalar_select %p14, %s13, 0
      %s16 = smul.u32 8, %s15
      %s18 = ssub.s32 1024, 256
      %19 = vsyncadd [#allocation3], %s18
      %s20 = smul.addr %s16, 32
      %s21 = scalar_lea.hbm %s0, %s20
      %s22 = sshll.u32 [#allocation2], 4
      %s23 = int_to_ptr.vmem [resolvable:$true] %s22
      %28 = dma.hbm_to_vmem [thread:$0]  %s21, 256, %s23, [#allocation3], 256, 256, 16
    $region5: #{tpu_custom_call.1} parent=1 // pred_fallthru
      _
    // Predicated region
    $region6: #{tpu_custom_call.1} parent=1 // pred_check
      _
    $region7: #{tpu_custom_call.1} parent=1 // pred_check_branch
      %30 = sbr.rel (0) target = $region9
    $region8: #{tpu_custom_call.1} parent=1 // pred_region
      %s31 = sadd.s32 0, 0
      %p32 = scmp.lt.s32.totalorder %s31, 0
      %s33 = scalar_select %p32, %s31, 0
      %s34 = smul.u32 8, %s33
      %s36 = ssub.s32 1024, 256
      %37 = vsyncadd [#allocation5], %s36
      %s38 = smul.addr %s34, 32
      %s39 = scalar_lea.hbm %s1, %s38
      %s40 = sshll.u32 [#allocation4], 4
      %s41 = int_to_ptr.vmem [resolvable:$true] %s40
      %46 = dma.hbm_to_vmem [thread:$0]  %s39, 256, %s41, [#allocation5], 256, 256, 16
    $region9: #{tpu_custom_call.1} parent=1 // pred_fallthru
      _
    // Predicated region
    $region10: #{tpu_custom_call.1} parent=1 // pred_check
      _
    $region11: #{tpu_custom_call.1} parent=1 // pred_check_branch
      %48 = sbr.rel (0) target = $region13
    $region12: #{tpu_custom_call.1} parent=1 // pred_region
      %49 = dma.done [#allocation3], 1024
    $region13: #{tpu_custom_call.1} parent=1 // pred_fallthru
      _
    // Predicated region
    $region14: #{tpu_custom_call.1} parent=1 // pred_check
      _
    $region15: #{tpu_custom_call.1} parent=1 // pred_check_branch
      %51 = sbr.rel (0) target = $region17
    $region16: #{tpu_custom_call.1} parent=1 // pred_region
      %52 = dma.done [#allocation5], 1024
    $region17: #{tpu_custom_call.1} parent=1 // pred_fallthru
      _
    %s53 = sadd.s32 0, 0
    %p54 = scmp.lt.s32.totalorder %s53, 0
    %s55 = scalar_select %p54, %s53, 0
    %s56 = smul.u32 8, %s55
    %s57 = sadd.s32 0, 0
    %p58 = scmp.lt.s32.totalorder %s57, 0
    %s59 = scalar_select %p58, %s57, 0
    %s60 = smul.u32 8, %s59
    %p61 = scmp.eq.s32.totalorder 0, 0
    // Predicated region
    $region18: #{tpu_custom_call.1} parent=1 // pred_check
      %p62 = pneg %p61
    $region19: #{tpu_custom_call.1} parent=1 // pred_check_branch
      %64 = sbr.rel (%p62) target = $region21
    $region20: #{tpu_custom_call.1} parent=1 // pred_region
      %vm65 = vcmask 7168
      %66 = vst.msk [vmem:[#allocation6] sm:$0xff] %vm65, 0.0
      %67 = vst.msk [vmem:[#allocation7] sm:$0xff] %vm65, 0.0
    $region21: #{tpu_custom_call.1} parent=1 // pred_fallthru
      _
    %v68 = vld [vmem:[#allocation2] sm:$0xff]
    %v69 = vld [vmem:[#allocation2 + $0x8] sm:$0xff]
    %v70 = vld [vmem:[#allocation2 + $0x10] sm:$0xff]
    %v71 = vld [vmem:[#allocation2 + $0x18] sm:$0xff]
    %v72 = vld [vmem:[#allocation2 + $0x20] sm:$0xff]
    %v73 = vld [vmem:[#allocation2 + $0x28] sm:$0xff]
    %v74 = vld [vmem:[#allocation2 + $0x30] sm:$0xff]
    %v75 = vld [vmem:[#allocation2 + $0x38] sm:$0xff]
    %v76 = vld [vmem:[#allocation4] sm:$0xff]
    %v77 = vld [vmem:[#allocation4 + $0x8] sm:$0xff]
    %v78 = vld [vmem:[#allocation4 + $0x10] sm:$0xff]
    %v79 = vld [vmem:[#allocation4 + $0x18] sm:$0xff]
    %v80 = vld [vmem:[#allocation4 + $0x20] sm:$0xff]
    %v81 = vld [vmem:[#allocation4 + $0x28] sm:$0xff]
    %v82 = vld [vmem:[#allocation4 + $0x30] sm:$0xff]
    %v83 = vld [vmem:[#allocation4 + $0x38] sm:$0xff]
    %v84 = vld [vmem:[#allocation6] sm:$0xff]
    %v85 = vmul.f32 %v76, %v68
    %v86 = vmul.f32 %v77, %v69
    %v87 = vmul.f32 %v78, %v70
    %v88 = vmul.f32 %v79, %v71
    %v89 = vmul.f32 %v80, %v72
    %v90 = vmul.f32 %v81, %v73
    %v91 = vmul.f32 %v82, %v74
    %v92 = vmul.f32 %v83, %v75
    %v101 = vcombine.low %v85, %v87
    %v102 = vcombine.high %v85, %v87
    %v103 = vcombine.low %v89, %v91
    %v104 = vcombine.high %v89, %v91
    %v106 = vunpack.c.l.s4 1983009808
    %v107 = vunpack.c.0.s8 %v106
    %v108 = vlaneseq
    %v109 = vshrl.u32 %v108, 7
    %v110 = vsub.s32 %v107, %v109
    %v111 = vrot.slane %v101, %v110
    %v113 = vunpack.c.l.s4 1983009808
    %v114 = vunpack.c.0.s8 %v113
    %v115 = vlaneseq
    %v116 = vshrl.u32 %v115, 7
    %v117 = vsub.s32 %v114, %v116
    %v118 = vrot.slane %v102, %v117
    %v120 = vunpack.c.l.s4 1983009808
    %v121 = vunpack.c.0.s8 %v120
    %v122 = vlaneseq
    %v123 = vshrl.u32 %v122, 7
    %v124 = vsub.s32 %v121, %v123
    %v125 = vrot.slane %v103, %v124
    %v127 = vunpack.c.l.s4 1983009808
    %v128 = vunpack.c.0.s8 %v127
    %v129 = vlaneseq
    %v130 = vshrl.u32 %v129, 7
    %v131 = vsub.s32 %v128, %v130
    %v132 = vrot.slane %v104, %v131
    %v133 = vcombine.low %v111, %v125
    %v134 = vcombine.high %v111, %v125
    %v135 = vcombine.low %v118, %v132
    %v136 = vcombine.high %v118, %v132
    %v137 = vcombine.low %v86, %v88
    %v138 = vcombine.high %v86, %v88
    %v139 = vcombine.low %v90, %v92
    %v140 = vcombine.high %v90, %v92
    %v142 = vunpack.c.l.s4 1983009808
    %v143 = vunpack.c.0.s8 %v142
    %v144 = vlaneseq
    %v145 = vshrl.u32 %v144, 7
    %v146 = vsub.s32 %v143, %v145
    %v147 = vrot.slane %v137, %v146
    %v149 = vunpack.c.l.s4 1983009808
    %v150 = vunpack.c.0.s8 %v149
    %v151 = vlaneseq
    %v152 = vshrl.u32 %v151, 7
    %v153 = vsub.s32 %v150, %v152
    %v154 = vrot.slane %v138, %v153
    %v156 = vunpack.c.l.s4 1983009808
    %v157 = vunpack.c.0.s8 %v156
    %v158 = vlaneseq
    %v159 = vshrl.u32 %v158, 7
    %v160 = vsub.s32 %v157, %v159
    %v161 = vrot.slane %v139, %v160
    %v163 = vunpack.c.l.s4 1983009808
    %v164 = vunpack.c.0.s8 %v163
    %v165 = vlaneseq
    %v166 = vshrl.u32 %v165, 7
    %v167 = vsub.s32 %v164, %v166
    %v168 = vrot.slane %v140, %v167
    %v169 = vcombine.low %v147, %v161
    %v170 = vcombine.high %v147, %v161
    %v171 = vcombine.low %v154, %v168
    %v172 = vcombine.high %v154, %v168
    %v181 = vadd.f32 %v133, %v134
    %v182 = vadd.f32 %v181, %v135
    %v183 = vadd.f32 %v182, %v136
    %v184 = vadd.f32 %v183, %v169
    %v185 = vadd.f32 %v184, %v170
    %v186 = vadd.f32 %v185, %v171
    %v187 = vadd.f32 %v186, %v172
    %188 = vadd.xlane.f32.xlu0 %v187
    %v189 = vpop.xlane.xlu0 %188
    %v190 = vadd.f32 %v84, %v189
    %vm191 = vcmask 7168
    %192 = vst.msk [vmem:[#allocation6] sm:$0xff] %vm191, %v190
    %v193 = vld [vmem:[#allocation7] sm:$0xff]
    %v194 = vadd.f32 %v76, %v68
    %v195 = vadd.f32 %v77, %v69
    %v196 = vadd.f32 %v78, %v70
    %v197 = vadd.f32 %v79, %v71
    %v198 = vadd.f32 %v80, %v72
    %v199 = vadd.f32 %v81, %v73
    %v200 = vadd.f32 %v82, %v74
    %v201 = vadd.f32 %v83, %v75
    %v210 = vcombine.low %v194, %v196
    %v211 = vcombine.high %v194, %v196
    %v212 = vcombine.low %v198, %v200
    %v213 = vcombine.high %v198, %v200
    %v215 = vunpack.c.l.s4 1983009808
    %v216 = vunpack.c.0.s8 %v215
    %v217 = vlaneseq
    %v218 = vshrl.u32 %v217, 7
    %v219 = vsub.s32 %v216, %v218
    %v220 = vrot.slane %v210, %v219
    %v222 = vunpack.c.l.s4 1983009808
    %v223 = vunpack.c.0.s8 %v222
    %v224 = vlaneseq
    %v225 = vshrl.u32 %v224, 7
    %v226 = vsub.s32 %v223, %v225
    %v227 = vrot.slane %v211, %v226
    %v229 = vunpack.c.l.s4 1983009808
    %v230 = vunpack.c.0.s8 %v229
    %v231 = vlaneseq
    %v232 = vshrl.u32 %v231, 7
    %v233 = vsub.s32 %v230, %v232
    %v234 = vrot.slane %v212, %v233
    %v236 = vunpack.c.l.s4 1983009808
    %v237 = vunpack.c.0.s8 %v236
    %v238 = vlaneseq
    %v239 = vshrl.u32 %v238, 7
    %v240 = vsub.s32 %v237, %v239
    %v241 = vrot.slane %v213, %v240
    %v242 = vcombine.low %v220, %v234
    %v243 = vcombine.high %v220, %v234
    %v244 = vcombine.low %v227, %v241
    %v245 = vcombine.high %v227, %v241
    %v246 = vcombine.low %v195, %v197
    %v247 = vcombine.high %v195, %v197
    %v248 = vcombine.low %v199, %v201
    %v249 = vcombine.high %v199, %v201
    %v251 = vunpack.c.l.s4 1983009808
    %v252 = vunpack.c.0.s8 %v251
    %v253 = vlaneseq
    %v254 = vshrl.u32 %v253, 7
    %v255 = vsub.s32 %v252, %v254
    %v256 = vrot.slane %v246, %v255
    %v258 = vunpack.c.l.s4 1983009808
    %v259 = vunpack.c.0.s8 %v258
    %v260 = vlaneseq
    %v261 = vshrl.u32 %v260, 7
    %v262 = vsub.s32 %v259, %v261
    %v263 = vrot.slane %v247, %v262
    %v265 = vunpack.c.l.s4 1983009808
    %v266 = vunpack.c.0.s8 %v265
    %v267 = vlaneseq
    %v268 = vshrl.u32 %v267, 7
    %v269 = vsub.s32 %v266, %v268
    %v270 = vrot.slane %v248, %v269
    %v272 = vunpack.c.l.s4 1983009808
    %v273 = vunpack.c.0.s8 %v272
    %v274 = vlaneseq
    %v275 = vshrl.u32 %v274, 7
    %v276 = vsub.s32 %v273, %v275
    %v277 = vrot.slane %v249, %v276
    %v278 = vcombine.low %v256, %v270
    %v279 = vcombine.high %v256, %v270
    %v280 = vcombine.low %v263, %v277
    %v281 = vcombine.high %v263, %v277
    %v290 = vadd.f32 %v242, %v243
    %v291 = vadd.f32 %v290, %v244
    %v292 = vadd.f32 %v291, %v245
    %v293 = vadd.f32 %v292, %v278
    %v294 = vadd.f32 %v293, %v279
    %v295 = vadd.f32 %v294, %v280
    %v296 = vadd.f32 %v295, %v281
    %297 = vadd.xlane.f32.xlu0 %v296
    %v298 = vpop.xlane.xlu0 %297
    %v299 = vadd.f32 %v193, %v298
    %300 = vst.msk [vmem:[#allocation7] sm:$0xff] %vm191, %v299
    // Predicated region
    $region22: #{tpu_custom_call.1} parent=1 // pred_check
      _
    $region23: #{tpu_custom_call.1} parent=1 // pred_check_branch
      %302 = sbr.rel (0) target = $region25
    $region24: #{tpu_custom_call.1} parent=1 // pred_region
      // Predicated region
      $region26: #{tpu_custom_call.1} parent=24 // pred_check
        _
      $region27: #{tpu_custom_call.1} parent=24 // pred_check_branch
        %304 = sbr.rel (0) target = $region29
      $region28: #{tpu_custom_call.1} parent=24 // pred_region
        // Predicated region
        $region30: #{tpu_custom_call.1} parent=28 // pred_check
          _
        $region31: #{tpu_custom_call.1} parent=28 // pred_check_branch
          %306 = sbr.rel target = $region33
        $region32: #{tpu_custom_call.1} parent=28 // pred_region
          // Predicated region
          $region45: #{tpu_custom_call.1} parent=32 // pred_check
            _
          $region46: #{tpu_custom_call.1} parent=32 // pred_check_branch
            %321 = sbr.rel (0) target = $region48
          $region47: #{tpu_custom_call.1} parent=32 // pred_region
            loop: start=0, step=1, limit=1
            $region49: #{tpu_custom_call.1} parent=47 // loop_pre_header
              _
            $region50: #{tpu_custom_call.1} parent=47 // loop_header
              %s324 = sphi 0, %s328
              %p325 = scmp.ge.s32.totalorder %s324, 1
              %s329 = sphi [#allocation6], [#allocation6]
              %s330 = sphi %s2, %s2
            $region51: #{tpu_custom_call.1} parent=47 // loop_header_branch
              %327 = sbr.rel (%p325) target = $region55
            $region52: #{tpu_custom_call.1} parent=47 // loop_body
              %v331 = vld [vmem:[%s329] sm:$0x3]
              %332 = vst [vmem:[%s330] sm:$0x3] %v331
            $region53: #{tpu_custom_call.1} parent=47 // loop_footer
              %s328 = sadd.s32 1, %s324
            $region54: #{tpu_custom_call.1} parent=47 // loop_footer_branch
              %323 = sbr.rel target = $region50
            $region55: #{tpu_custom_call.1} parent=47 // loop_exit
              _
          $region48: #{tpu_custom_call.1} parent=32 // pred_fallthru
            _
        $region33: #{tpu_custom_call.1} parent=28 // pred_fallthru
          _
        // Predicated region
        $region34: #{tpu_custom_call.1} parent=28 // pred_check
          _
        $region35: #{tpu_custom_call.1} parent=28 // pred_check_branch
          %308 = sbr.rel (0) target = $region37
        $region36: #{tpu_custom_call.1} parent=28 // pred_region
          loop: start=0, step=1, limit=1
          $region38: #{tpu_custom_call.1} parent=36 // loop_pre_header
            _
          $region39: #{tpu_custom_call.1} parent=36 // loop_header
            %s311 = sphi 0, %s315
            %p312 = scmp.ge.s32.totalorder %s311, 1
            %s316 = sphi [#allocation6], [#allocation6]
            %s317 = sphi %s2, %s2
          $region40: #{tpu_custom_call.1} parent=36 // loop_header_branch
            %314 = sbr.rel (%p312) target = $region44
          $region41: #{tpu_custom_call.1} parent=36 // loop_body
            %v318 = vld [vmem:[%s316] sm:$0x3]
            %319 = vst [vmem:[%s317] sm:$0x3] %v318
          $region42: #{tpu_custom_call.1} parent=36 // loop_footer
            %s315 = sadd.s32 1, %s311
          $region43: #{tpu_custom_call.1} parent=36 // loop_footer_branch
            %310 = sbr.rel target = $region39
          $region44: #{tpu_custom_call.1} parent=36 // loop_exit
            _
        $region37: #{tpu_custom_call.1} parent=28 // pred_fallthru
          _
      $region29: #{tpu_custom_call.1} parent=24 // pred_fallthru
        _
      %333 = vnop
    $region25: #{tpu_custom_call.1} parent=1 // pred_fallthru
      _
    // Predicated region
    $region56: #{tpu_custom_call.1} parent=1 // pred_check
      _
    $region57: #{tpu_custom_call.1} parent=1 // pred_check_branch
      %335 = sbr.rel (0) target = $region59
    $region58: #{tpu_custom_call.1} parent=1 // pred_region
      // Predicated region
      $region60: #{tpu_custom_call.1} parent=58 // pred_check
        _
      $region61: #{tpu_custom_call.1} parent=58 // pred_check_branch
        %337 = sbr.rel (0) target = $region63
      $region62: #{tpu_custom_call.1} parent=58 // pred_region
        // Predicated region
        $region64: #{tpu_custom_call.1} parent=62 // pred_check
          _
        $region65: #{tpu_custom_call.1} parent=62 // pred_check_branch
          %339 = sbr.rel target = $region67
        $region66: #{tpu_custom_call.1} parent=62 // pred_region
          // Predicated region
          $region79: #{tpu_custom_call.1} parent=66 // pred_check
            _
          $region80: #{tpu_custom_call.1} parent=66 // pred_check_branch
            %354 = sbr.rel (0) target = $region82
          $region81: #{tpu_custom_call.1} parent=66 // pred_region
            loop: start=0, step=1, limit=1
            $region83: #{tpu_custom_call.1} parent=81 // loop_pre_header
              _
            $region84: #{tpu_custom_call.1} parent=81 // loop_header
              %s357 = sphi 0, %s361
              %p358 = scmp.ge.s32.totalorder %s357, 1
              %s362 = sphi [#allocation7], [#allocation7]
              %s363 = sphi %s3, %s3
            $region85: #{tpu_custom_call.1} parent=81 // loop_header_branch
              %360 = sbr.rel (%p358) target = $region89
            $region86: #{tpu_custom_call.1} parent=81 // loop_body
              %v364 = vld [vmem:[%s362] sm:$0x3]
              %365 = vst [vmem:[%s363] sm:$0x3] %v364
            $region87: #{tpu_custom_call.1} parent=81 // loop_footer
              %s361 = sadd.s32 1, %s357
            $region88: #{tpu_custom_call.1} parent=81 // loop_footer_branch
              %356 = sbr.rel target = $region84
            $region89: #{tpu_custom_call.1} parent=81 // loop_exit
              _
          $region82: #{tpu_custom_call.1} parent=66 // pred_fallthru
            _
        $region67: #{tpu_custom_call.1} parent=62 // pred_fallthru
          _
        // Predicated region
        $region68: #{tpu_custom_call.1} parent=62 // pred_check
          _
        $region69: #{tpu_custom_call.1} parent=62 // pred_check_branch
          %341 = sbr.rel (0) target = $region71
        $region70: #{tpu_custom_call.1} parent=62 // pred_region
          loop: start=0, step=1, limit=1
          $region72: #{tpu_custom_call.1} parent=70 // loop_pre_header
            _
          $region73: #{tpu_custom_call.1} parent=70 // loop_header
            %s344 = sphi 0, %s348
            %p345 = scmp.ge.s32.totalorder %s344, 1
            %s349 = sphi [#allocation7], [#allocation7]
            %s350 = sphi %s3, %s3
          $region74: #{tpu_custom_call.1} parent=70 // loop_header_branch
            %347 = sbr.rel (%p345) target = $region78
          $region75: #{tpu_custom_call.1} parent=70 // loop_body
            %v351 = vld [vmem:[%s349] sm:$0x3]
            %352 = vst [vmem:[%s350] sm:$0x3] %v351
          $region76: #{tpu_custom_call.1} parent=70 // loop_footer
            %s348 = sadd.s32 1, %s344
          $region77: #{tpu_custom_call.1} parent=70 // loop_footer_branch
            %343 = sbr.rel target = $region73
          $region78: #{tpu_custom_call.1} parent=70 // loop_exit
            _
        $region71: #{tpu_custom_call.1} parent=62 // pred_fallthru
          _
      $region63: #{tpu_custom_call.1} parent=58 // pred_fallthru
        _
      %366 = vnop
    $region59: #{tpu_custom_call.1} parent=1 // pred_fallthru
      _
    // Predicated region
    $region90: #{tpu_custom_call.1} parent=1 // pred_check
      _
    $region91: #{tpu_custom_call.1} parent=1 // pred_check_branch
      %368 = sbr.rel (0) target = $region93
    $region92: #{tpu_custom_call.1} parent=1 // pred_region
      _
    $region93: #{tpu_custom_call.1} parent=1 // pred_fallthru
      _
    // Predicated region
    $region94: #{tpu_custom_call.1} parent=1 // pred_check
      _
    $region95: #{tpu_custom_call.1} parent=1 // pred_check_branch
      %370 = sbr.rel (0) target = $region97
    $region96: #{tpu_custom_call.1} parent=1 // pred_region
      _
    $region97: #{tpu_custom_call.1} parent=1 // pred_fallthru
      _
    %371 = vsyncpa [#allocation3], 1
    %372 = vsyncpa [#allocation5], 1

</llo_original>
